<compile_context>
chip_gen: v7x
topology: tpu7x:2x2x1
jax: 0.10.0
libtpu: 0.0.40
codegen_flags: <defaults>
</compile_context>

<pallas_src>
import numpy as np
import jax
import jax.numpy as jnp
from jax.experimental import pallas as pl
from jax.experimental.pallas import tpu as pltpu

B_TILE = 128    # rows per grid step (sublane axis; multiple of 16 for int16 tiling)
S_PAD = 128     # padded sequence length (lane axis)
PAD_CODE = -1   # padding codepoint (distinct from NUL so '\x00' tokenizes correctly)


def _tokenize_kernel(codes_ref, tri_ref, packed_ref):
    c = codes_ref[...]  # (B_TILE, S_PAD) int32 codepoints, PAD_CODE = padding

    # TODO(synk): character classes cover ASCII only; Python's str.isalnum /
    # str.isspace also accept non-ASCII unicode, which has no clean vectorized
    # equivalent here (non-ASCII codepoints are classified as punctuation).
    cl = c | 32  # lowercase-fold: merges upper/lower range tests into one
    is_digit = (c >= 48) & (c <= 57)
    is_alpha = (cl >= 97) & (cl <= 122)
    is_word = is_digit | is_alpha | (c == 95)                     # regex \w
    is_space = (c == 32) | ((c >= 9) & (c <= 13))                 # ASCII whitespace
    is_pad = c < 0
    is_punct = jnp.logical_not(is_word | is_space | is_pad)

    iw = is_word.astype(jnp.int32)
    ip = is_punct.astype(jnp.int32)

    # previous-character word mask: shift right by one along the lane axis (XLU),
    # then zero out the wrapped-around column 0.
    col = jax.lax.broadcasted_iota(jnp.int32, c.shape, dimension=1)
    prev = pltpu.roll(iw, shift=1, axis=1)
    prev = jnp.where(col == 0, 0, prev)

    # a token starts at the first char of every word run and at every punct char
    token_start = ((is_word & (prev == 0)) | is_punct)
    ts_bf16 = token_start.astype(jnp.float32).astype(jnp.bfloat16)

    # Inclusive prefix sum along lanes as a single MXU matmul against a constant
    # upper-triangular (S_PAD, S_PAD) bf16 matrix.  0/1 operands are exact in
    # bf16 and sums (<= 128) accumulate exactly in f32.
    tid = jnp.dot(ts_bf16, tri_ref[...],
                  preferred_element_type=jnp.float32).astype(jnp.int32)

    # Pack everything into one int16 per char (max value 514, fits easily):
    #   bit 0      = is_word
    #   bit 1      = is_punct
    #   bits 2..   = token id (1-based cumulative count of token starts)
    packed_ref[...] = ((tid << 2) | (ip << 1) | iw).astype(jnp.int16)


@jax.jit
def pallas_char_classify(codes, tri):
    B, S = codes.shape
    out_shape = jax.ShapeDtypeStruct((B, S), jnp.int16)
    grid_spec = pltpu.PrefetchScalarGridSpec(
        num_scalar_prefetch=0,
        grid=(B // B_TILE,),
        in_specs=[
            pl.BlockSpec((B_TILE, S), lambda i: (i, 0)),
            # constant triangular matrix: same block every step -> stays resident
            pl.BlockSpec((S_PAD, S_PAD), lambda i: (0, 0)),
        ],
        out_specs=pl.BlockSpec((B_TILE, S), lambda i: (i, 0)),
    )
    return pl.pallas_call(
        _tokenize_kernel,
        out_shape=out_shape,
        grid_spec=grid_spec,
        compiler_params=pltpu.CompilerParams(
            dimension_semantics=("parallel",)),  # v7x: split batch across both TCs
    )(codes, tri)


_TRI_CACHE = None


def _tri_const():
    global _TRI_CACHE
    if _TRI_CACHE is None:
        k = np.arange(S_PAD, dtype=np.int32)
        tri = (k[:, None] <= k[None, :]).astype(np.float32)  # tri[k, j] = 1 if k <= j
        _TRI_CACHE = jnp.asarray(tri, dtype=jnp.bfloat16)
    return _TRI_CACHE


def space_punct_tokenize(v):
    """Pallas-backed equivalent of SpacePunctuationStringToListTokenizer.forward."""
    single = isinstance(v, str)
    inputs = [v] if single else list(v)
    n = len(inputs)

    # pad batch to a multiple of B_TILE (minimum one tile); no batch-size cap
    b_pad = max(B_TILE, ((n + B_TILE - 1) // B_TILE) * B_TILE)

    # TODO(synk): strings longer than S_PAD chars are truncated; a production
    # version would grid over 512-lane sequence tiles with a token-id offset
    # and previous-tile word bit carried in SMEM scratch.
    arr = np.full((b_pad, S_PAD), PAD_CODE, dtype=np.int32)
    for i, s in enumerate(inputs):
        cps = [ord(ch) for ch in s][:S_PAD]
        arr[i, :len(cps)] = cps

    packed = pallas_char_classify(jnp.asarray(arr), _tri_const())
    packed = np.asarray(jax.block_until_ready(packed))  # single D2H transfer (int16)

    iw = packed & 1
    ip = (packed >> 1) & 1
    tid = packed >> 2

    tokens = []
    for i, s in enumerate(inputs):
        m = min(len(s), S_PAD)
        seq_tokens = []
        cur_tid = -1
        cur_chars = []
        for j in range(m):
            if iw[i, j] or ip[i, j]:
                t = int(tid[i, j])
                if t != cur_tid:
                    if cur_chars:
                        seq_tokens.append("".join(cur_chars))
                    cur_chars = []
                    cur_tid = t
                cur_chars.append(chr(int(arr[i, j])))
        if cur_chars:
            seq_tokens.append("".join(cur_chars))
        tokens.append(seq_tokens)
    return tokens[0] if single else tokens


def reference_tokenize(v):
    """Pure-Python re-implementation of the torch module (ground truth)."""
    def is_w(ch):
        return ch.isalnum() or ch == "_"

    single = isinstance(v, str)
    inputs = [v] if single else list(v)
    tokens = []
    for sequence in inputs:
        seq_tokens = []
        word = []
        for ch in sequence:
            if is_w(ch):
                word.append(ch)
            elif word:
                seq_tokens.append("".join(word))
                word = []
            if (not is_w(ch)) and (not ch.isspace()):
                seq_tokens.append(ch)
        if word:
            seq_tokens.append("".join(word))
        tokens.append(seq_tokens)
    return tokens[0] if single else tokens


if __name__ == "__main__":
    # deterministic example inputs: 4 random ASCII strings + hand-written ones
    key = jax.random.PRNGKey(0)
    alphabet = list("abcXYZ019_ .,!?-; ")
    idx = np.asarray(jax.random.randint(key, (4, 48), 0, len(alphabet)))
    rand_strs = ["".join(alphabet[int(k)] for k in row) for row in idx]

    batch = rand_strs + [
        "hello, world! foo_bar baz-qux 123",
        "a+b = c__2 ;  end.",
        "nul\x00char and trailing   ",
        "",
    ]

    got_batch = space_punct_tokenize(batch)
    want_batch = reference_tokenize(batch)
    assert got_batch == want_batch, (got_batch, want_batch)

    single = "Split,this_string!  now"
    got_single = space_punct_tokenize(single)
    want_single = reference_tokenize(single)
    assert got_single == want_single, (got_single, want_single)

    print("KERNEL_OK")
</pallas_src>

<mosaic_0001>
module attributes {stable_mosaic.version = 11 : i64} {
  func.func @_tokenize_kernel(%arg0: i32, %arg1: memref<128x128xi32, #tpu.memory_space<vmem>>, %arg2: memref<128x128xbf16, #tpu.memory_space<vmem>>, %arg3: memref<128x128xi16, #tpu.memory_space<vmem>>) attributes {dimension_semantics = [#tpu.dimension_semantics<parallel>], iteration_bounds = array<i64: 1>, scalar_prefetch = 0 : i64, scratch_operands = 0 : i64, tpu.core_type = #tpu.core_type<tc>, window_params = [{transform_indices = @transform_0, window_bounds = array<i64: 128, 128>}, {pipeline_mode = #tpu.pipeline_mode<synchronous>, transform_indices = @transform_1, window_bounds = array<i64: 128, 128>}, {transform_indices = @transform_2, window_bounds = array<i64: 128, 128>}]} {
    %c0 = arith.constant 0 : index
    %c0_0 = arith.constant 0 : index
    %0 = vector.load %arg1[%c0, %c0_0] : memref<128x128xi32, #tpu.memory_space<vmem>>, vector<128x128xi32>
    %c32_i32 = arith.constant 32 : i32
    %1 = vector.broadcast %c32_i32 : i32 to vector<128x128xi32>
    %2 = arith.ori %0, %1 : vector<128x128xi32>
    %c48_i32 = arith.constant 48 : i32
    %3 = vector.broadcast %c48_i32 : i32 to vector<128x128xi32>
    %4 = arith.cmpi sge, %0, %3 : vector<128x128xi32>
    %c57_i32 = arith.constant 57 : i32
    %5 = vector.broadcast %c57_i32 : i32 to vector<128x128xi32>
    %6 = arith.cmpi sle, %0, %5 : vector<128x128xi32>
    %7 = arith.andi %4, %6 : vector<128x128xi1>
    %c97_i32 = arith.constant 97 : i32
    %8 = vector.broadcast %c97_i32 : i32 to vector<128x128xi32>
    %9 = arith.cmpi sge, %2, %8 : vector<128x128xi32>
    %c122_i32 = arith.constant 122 : i32
    %10 = vector.broadcast %c122_i32 : i32 to vector<128x128xi32>
    %11 = arith.cmpi sle, %2, %10 : vector<128x128xi32>
    %12 = arith.andi %9, %11 : vector<128x128xi1>
    %13 = arith.ori %7, %12 : vector<128x128xi1>
    %c95_i32 = arith.constant 95 : i32
    %14 = vector.broadcast %c95_i32 : i32 to vector<128x128xi32>
    %15 = arith.cmpi eq, %0, %14 : vector<128x128xi32>
    %16 = arith.ori %13, %15 : vector<128x128xi1>
    %c32_i32_1 = arith.constant 32 : i32
    %17 = vector.broadcast %c32_i32_1 : i32 to vector<128x128xi32>
    %18 = arith.cmpi eq, %0, %17 : vector<128x128xi32>
    %c9_i32 = arith.constant 9 : i32
    %19 = vector.broadcast %c9_i32 : i32 to vector<128x128xi32>
    %20 = arith.cmpi sge, %0, %19 : vector<128x128xi32>
    %c13_i32 = arith.constant 13 : i32
    %21 = vector.broadcast %c13_i32 : i32 to vector<128x128xi32>
    %22 = arith.cmpi sle, %0, %21 : vector<128x128xi32>
    %23 = arith.andi %20, %22 : vector<128x128xi1>
    %24 = arith.ori %18, %23 : vector<128x128xi1>
    %c0_i32 = arith.constant 0 : i32
    %25 = vector.broadcast %c0_i32 : i32 to vector<128x128xi32>
    %26 = arith.cmpi slt, %0, %25 : vector<128x128xi32>
    %27 = arith.ori %16, %24 : vector<128x128xi1>
    %28 = arith.ori %27, %26 : vector<128x128xi1>
    %cst = arith.constant dense<true> : vector<128x128xi1>
    %29 = arith.xori %28, %cst : vector<128x128xi1>
    %30 = arith.extui %16 : vector<128x128xi1> to vector<128x128xi32>
    %31 = arith.extui %29 : vector<128x128xi1> to vector<128x128xi32>
    %32 = tpu.iota {dimensions = array<i32: 1>} : vector<128x128xi32>
    %c1_i32 = arith.constant 1 : i32
    %33 = tpu.dynamic_rotate %30 by %c1_i32 dim 1 : vector<128x128xi32>, i32 -> vector<128x128xi32>
    %c0_i32_2 = arith.constant 0 : i32
    %34 = vector.broadcast %c0_i32_2 : i32 to vector<128x128xi32>
    %35 = arith.cmpi eq, %32, %34 : vector<128x128xi32>
    %c0_i32_3 = arith.constant 0 : i32
    %36 = vector.broadcast %c0_i32_3 : i32 to vector<128x128xi32>
    %37 = arith.select %35, %36, %33 : vector<128x128xi1>, vector<128x128xi32>
    %c0_i32_4 = arith.constant 0 : i32
    %38 = vector.broadcast %c0_i32_4 : i32 to vector<128x128xi32>
    %39 = arith.cmpi eq, %37, %38 : vector<128x128xi32>
    %40 = arith.andi %16, %39 : vector<128x128xi1>
    %41 = arith.ori %40, %29 : vector<128x128xi1>
    %42 = arith.extui %41 : vector<128x128xi1> to vector<128x128xi32>
    %43 = arith.sitofp %42 : vector<128x128xi32> to vector<128x128xf32>
    %44 = arith.truncf %43 : vector<128x128xf32> to vector<128x128xbf16>
    %c0_5 = arith.constant 0 : index
    %c0_6 = arith.constant 0 : index
    %45 = vector.load %arg2[%c0_5, %c0_6] : memref<128x128xbf16, #tpu.memory_space<vmem>>, vector<128x128xbf16>
    %cst_7 = arith.constant dense<0.000000e+00> : vector<128x128xf32>
    %46 = tpu.matmul %44, %45, %cst_7 {dimension_numbers = #tpu.dot_dimension_numbers<[1], [0], [0], [1], [0, 0, 1, 1], [], []>} : vector<128x128xbf16>, vector<128x128xbf16>, vector<128x128xf32> -> vector<128x128xf32>
    %47 = arith.fptosi %46 : vector<128x128xf32> to vector<128x128xi32>
    %c2_i32 = arith.constant 2 : i32
    %48 = vector.broadcast %c2_i32 : i32 to vector<128x128xi32>
    %49 = arith.shli %47, %48 : vector<128x128xi32>
    %c1_i32_8 = arith.constant 1 : i32
    %50 = vector.broadcast %c1_i32_8 : i32 to vector<128x128xi32>
    %51 = arith.shli %31, %50 : vector<128x128xi32>
    %52 = arith.ori %49, %51 : vector<128x128xi32>
    %53 = arith.ori %52, %30 : vector<128x128xi32>
    %54 = arith.trunci %53 : vector<128x128xi32> to vector<128x128xi16>
    %c0_9 = arith.constant 0 : index
    %c0_10 = arith.constant 0 : index
    %55 = vector.load %arg3[%c0_9, %c0_10] : memref<128x128xi16, #tpu.memory_space<vmem>>, vector<128x128xi16>
    tpu.vector_store %arg3[%c0_9, %c0_10], %54 {strides = array<i32>} : memref<128x128xi16, #tpu.memory_space<vmem>>, vector<128x128xi16>,
    return
  }
  func.func @transform_0(%arg0: i32) -> (i32, i32) {
    %c0_i32 = arith.constant 0 : i32
    %c0_i32_0 = arith.constant 0 : i32
    return %arg0, %c0_i32 : i32, i32
  }
  func.func @transform_1(%arg0: i32) -> (i32, i32) {
    %c0_i32 = arith.constant 0 : i32
    %c0_i32_0 = arith.constant 0 : i32
    %c0_i32_1 = arith.constant 0 : i32
    return %c0_i32, %c0_i32_0 : i32, i32
  }
  func.func @transform_2(%arg0: i32) -> (i32, i32) {
    %c0_i32 = arith.constant 0 : i32
    %c0_i32_0 = arith.constant 0 : i32
    return %arg0, %c0_i32 : i32, i32
  }
}

</mosaic_0001>

<llo_original>
// kernel: pallas_char_classify.1
$region0: #{pallas_char_classify.1}
  #allocation0 [shape = 'u32[]', space=smem, size = 0x4, offset = 0x4, fixed_abs, tag = 'smem constant byte address 0x4 - core index']
  #allocation1 [shape = 'u32[144,128]{1,0:T(1,128)}', space=vmem, size = 0x12000, scoped, tag = 'internal scratch']
  %s0 = inlined_call_operand.hbm [shape: s32[128,128], index: 0, kind: input, shape index: {}]
  %s1 = inlined_call_operand.hbm [shape: bf16[128,128], index: 1, kind: input, shape index: {}]
  %s2 = inlined_call_operand.hbm [shape: s16[128,128], index: 2, kind: output, shape index: {}]
  %s3 = sld [smem:[#allocation0]]
  $region26: #{pallas_char_classify.1} parent=0
    _
  %s5 = ssub.s32 1, %s3
  %s6 = scalar_select 0, %s5, %s3
  $region1: #{pallas_char_classify.1} parent=0
    #allocation2 [shape = 'u8[65536]{0}', space=vmem, size = 0x10000, scoped, tag = 'input window, operand 0, single buffered']
    #allocation3 [shape = 's32[1]{0}', space=sflag, size = 0x4, scoped, tag = 'scoped memory for pallas_char_classify.1']
    #allocation4 [shape = 's32[1]{0}', space=sflag, size = 0x4, scoped, tag = 'scoped memory for pallas_char_classify.1']
    #allocation5 [shape = 'u8[32768]{0}', space=vmem, size = 0x8000, scoped, tag = 'input window, operand 1, single buffered']
    #allocation6 [shape = 's32[1]{0}', space=sflag, size = 0x4, scoped, tag = 'scoped memory for pallas_char_classify.1']
    #allocation7 [shape = 'u8[32768]{0}', space=vmem, size = 0x8000, scoped, tag = 'output window, operand 0, single buffered']
    %7 = vsyncpa [#allocation3], 0
    %8 = vsyncpa [#allocation6], 0
    %9 = vsyncpa [#allocation4], 0
    // Predicated region
    $region2: #{pallas_char_classify.1} parent=1 // pred_check
      _
    $region3: #{pallas_char_classify.1} parent=1 // pred_check_branch
      %11 = sbr.rel (0) target = $region5
    $region4: #{pallas_char_classify.1} parent=1 // pred_region
      %s13 = ssub.s32 2048, 2048
      %14 = vsyncadd [#allocation3], %s13
      %s15 = sshll.u32 [#allocation2], 4
      %s16 = int_to_ptr.vmem [resolvable:$true] %s15
      %21 = dma.hbm_to_vmem [thread:$0]  %s0, 2048, %s16, [#allocation3], 128, 128, 8
    $region5: #{pallas_char_classify.1} parent=1 // pred_fallthru
      _
    // Predicated region
    $region6: #{pallas_char_classify.1} parent=1 // pred_check
      _
    $region7: #{pallas_char_classify.1} parent=1 // pred_check_branch
      %23 = sbr.rel (0) target = $region9
    $region8: #{pallas_char_classify.1} parent=1 // pred_region
      %s25 = ssub.s32 1024, 1024
      %26 = vsyncadd [#allocation6], %s25
      %s27 = sshll.u32 [#allocation5], 4
      %s28 = int_to_ptr.vmem [resolvable:$true] %s27
      %33 = dma.hbm_to_vmem [thread:$0]  %s1, 1024, %s28, [#allocation6], 64, 64, 4
    $region9: #{pallas_char_classify.1} parent=1 // pred_fallthru
      _
    // Predicated region
    $region10: #{pallas_char_classify.1} parent=1 // pred_check
      _
    $region11: #{pallas_char_classify.1} parent=1 // pred_check_branch
      %35 = sbr.rel (0) target = $region13
    $region12: #{pallas_char_classify.1} parent=1 // pred_region
      %36 = dma.done [#allocation3], 2048
    $region13: #{pallas_char_classify.1} parent=1 // pred_fallthru
      _
    // Predicated region
    $region14: #{pallas_char_classify.1} parent=1 // pred_check
      _
    $region15: #{pallas_char_classify.1} parent=1 // pred_check_branch
      %38 = sbr.rel (0) target = $region17
    $region16: #{pallas_char_classify.1} parent=1 // pred_region
      %39 = dma.done [#allocation6], 1024
    $region17: #{pallas_char_classify.1} parent=1 // pred_fallthru
      _
    %v41 = vld [vmem:[#allocation2] sm:$0xff]
    %v42 = vld [vmem:[#allocation2 + $0x8] sm:$0xff]
    %v43 = vld [vmem:[#allocation2 + $0x10] sm:$0xff]
    %v44 = vld [vmem:[#allocation2 + $0x18] sm:$0xff]
    %v45 = vld [vmem:[#allocation2 + $0x20] sm:$0xff]
    %v46 = vld [vmem:[#allocation2 + $0x28] sm:$0xff]
    %v47 = vld [vmem:[#allocation2 + $0x30] sm:$0xff]
    %v48 = vld [vmem:[#allocation2 + $0x38] sm:$0xff]
    %v49 = vld [vmem:[#allocation2 + $0x40] sm:$0xff]
    %v50 = vld [vmem:[#allocation2 + $0x48] sm:$0xff]
    %v51 = vld [vmem:[#allocation2 + $0x50] sm:$0xff]
    %v52 = vld [vmem:[#allocation2 + $0x58] sm:$0xff]
    %v53 = vld [vmem:[#allocation2 + $0x60] sm:$0xff]
    %v54 = vld [vmem:[#allocation2 + $0x68] sm:$0xff]
    %v55 = vld [vmem:[#allocation2 + $0x70] sm:$0xff]
    %v56 = vld [vmem:[#allocation2 + $0x78] sm:$0xff]
    %v57 = vor.u32 %v41, 32
    %v58 = vor.u32 %v42, 32
    %v59 = vor.u32 %v43, 32
    %v60 = vor.u32 %v44, 32
    %v61 = vor.u32 %v45, 32
    %v62 = vor.u32 %v46, 32
    %v63 = vor.u32 %v47, 32
    %v64 = vor.u32 %v48, 32
    %v65 = vor.u32 %v49, 32
    %v66 = vor.u32 %v50, 32
    %v67 = vor.u32 %v51, 32
    %v68 = vor.u32 %v52, 32
    %v69 = vor.u32 %v53, 32
    %v70 = vor.u32 %v54, 32
    %v71 = vor.u32 %v55, 32
    %v72 = vor.u32 %v56, 32
    %vm73 = vcmp.ge.s32.totalorder %v41, 48
    %vm74 = vcmp.ge.s32.totalorder %v42, 48
    %vm75 = vcmp.ge.s32.totalorder %v43, 48
    %vm76 = vcmp.ge.s32.totalorder %v44, 48
    %vm77 = vcmp.ge.s32.totalorder %v45, 48
    %vm78 = vcmp.ge.s32.totalorder %v46, 48
    %vm79 = vcmp.ge.s32.totalorder %v47, 48
    %vm80 = vcmp.ge.s32.totalorder %v48, 48
    %vm81 = vcmp.ge.s32.totalorder %v49, 48
    %vm82 = vcmp.ge.s32.totalorder %v50, 48
    %vm83 = vcmp.ge.s32.totalorder %v51, 48
    %vm84 = vcmp.ge.s32.totalorder %v52, 48
    %vm85 = vcmp.ge.s32.totalorder %v53, 48
    %vm86 = vcmp.ge.s32.totalorder %v54, 48
    %vm87 = vcmp.ge.s32.totalorder %v55, 48
    %vm88 = vcmp.ge.s32.totalorder %v56, 48
    %vm89 = vcmp.le.s32.totalorder %v41, 57
    %vm90 = vcmp.le.s32.totalorder %v42, 57
    %vm91 = vcmp.le.s32.totalorder %v43, 57
    %vm92 = vcmp.le.s32.totalorder %v44, 57
    %vm93 = vcmp.le.s32.totalorder %v45, 57
    %vm94 = vcmp.le.s32.totalorder %v46, 57
    %vm95 = vcmp.le.s32.totalorder %v47, 57
    %vm96 = vcmp.le.s32.totalorder %v48, 57
    %vm97 = vcmp.le.s32.totalorder %v49, 57
    %vm98 = vcmp.le.s32.totalorder %v50, 57
    %vm99 = vcmp.le.s32.totalorder %v51, 57
    %vm100 = vcmp.le.s32.totalorder %v52, 57
    %vm101 = vcmp.le.s32.totalorder %v53, 57
    %vm102 = vcmp.le.s32.totalorder %v54, 57
    %vm103 = vcmp.le.s32.totalorder %v55, 57
    %vm104 = vcmp.le.s32.totalorder %v56, 57
    %vm105 = vmand %vm73, %vm89
    %vm106 = vmand %vm74, %vm90
    %vm107 = vmand %vm75, %vm91
    %vm108 = vmand %vm76, %vm92
    %vm109 = vmand %vm77, %vm93
    %vm110 = vmand %vm78, %vm94
    %vm111 = vmand %vm79, %vm95
    %vm112 = vmand %vm80, %vm96
    %vm113 = vmand %vm81, %vm97
    %vm114 = vmand %vm82, %vm98
    %vm115 = vmand %vm83, %vm99
    %vm116 = vmand %vm84, %vm100
    %vm117 = vmand %vm85, %vm101
    %vm118 = vmand %vm86, %vm102
    %vm119 = vmand %vm87, %vm103
    %vm120 = vmand %vm88, %vm104
    %vm121 = vcmp.ge.s32.totalorder %v57, 97
    %vm122 = vcmp.ge.s32.totalorder %v58, 97
    %vm123 = vcmp.ge.s32.totalorder %v59, 97
    %vm124 = vcmp.ge.s32.totalorder %v60, 97
    %vm125 = vcmp.ge.s32.totalorder %v61, 97
    %vm126 = vcmp.ge.s32.totalorder %v62, 97
    %vm127 = vcmp.ge.s32.totalorder %v63, 97
    %vm128 = vcmp.ge.s32.totalorder %v64, 97
    %vm129 = vcmp.ge.s32.totalorder %v65, 97
    %vm130 = vcmp.ge.s32.totalorder %v66, 97
    %vm131 = vcmp.ge.s32.totalorder %v67, 97
    %vm132 = vcmp.ge.s32.totalorder %v68, 97
    %vm133 = vcmp.ge.s32.totalorder %v69, 97
    %vm134 = vcmp.ge.s32.totalorder %v70, 97
    %vm135 = vcmp.ge.s32.totalorder %v71, 97
    %vm136 = vcmp.ge.s32.totalorder %v72, 97
    %vm137 = vcmp.le.s32.totalorder %v57, 122
    %vm138 = vcmp.le.s32.totalorder %v58, 122
    %vm139 = vcmp.le.s32.totalorder %v59, 122
    %vm140 = vcmp.le.s32.totalorder %v60, 122
    %vm141 = vcmp.le.s32.totalorder %v61, 122
    %vm142 = vcmp.le.s32.totalorder %v62, 122
    %vm143 = vcmp.le.s32.totalorder %v63, 122
    %vm144 = vcmp.le.s32.totalorder %v64, 122
    %vm145 = vcmp.le.s32.totalorder %v65, 122
    %vm146 = vcmp.le.s32.totalorder %v66, 122
    %vm147 = vcmp.le.s32.totalorder %v67, 122
    %vm148 = vcmp.le.s32.totalorder %v68, 122
    %vm149 = vcmp.le.s32.totalorder %v69, 122
    %vm150 = vcmp.le.s32.totalorder %v70, 122
    %vm151 = vcmp.le.s32.totalorder %v71, 122
    %vm152 = vcmp.le.s32.totalorder %v72, 122
    %vm153 = vmand %vm121, %vm137
    %vm154 = vmand %vm122, %vm138
    %vm155 = vmand %vm123, %vm139
    %vm156 = vmand %vm124, %vm140
    %vm157 = vmand %vm125, %vm141
    %vm158 = vmand %vm126, %vm142
    %vm159 = vmand %vm127, %vm143
    %vm160 = vmand %vm128, %vm144
    %vm161 = vmand %vm129, %vm145
    %vm162 = vmand %vm130, %vm146
    %vm163 = vmand %vm131, %vm147
    %vm164 = vmand %vm132, %vm148
    %vm165 = vmand %vm133, %vm149
    %vm166 = vmand %vm134, %vm150
    %vm167 = vmand %vm135, %vm151
    %vm168 = vmand %vm136, %vm152
    %vm169 = vmor %vm105, %vm153
    %vm170 = vmor %vm106, %vm154
    %vm171 = vmor %vm107, %vm155
    %vm172 = vmor %vm108, %vm156
    %vm173 = vmor %vm109, %vm157
    %vm174 = vmor %vm110, %vm158
    %vm175 = vmor %vm111, %vm159
    %vm176 = vmor %vm112, %vm160
    %vm177 = vmor %vm113, %vm161
    %vm178 = vmor %vm114, %vm162
    %vm179 = vmor %vm115, %vm163
    %vm180 = vmor %vm116, %vm164
    %vm181 = vmor %vm117, %vm165
    %vm182 = vmor %vm118, %vm166
    %vm183 = vmor %vm119, %vm167
    %vm184 = vmor %vm120, %vm168
    %vm185 = vcmp.eq.s32.totalorder %v41, 95
    %vm186 = vcmp.eq.s32.totalorder %v42, 95
    %vm187 = vcmp.eq.s32.totalorder %v43, 95
    %vm188 = vcmp.eq.s32.totalorder %v44, 95
    %vm189 = vcmp.eq.s32.totalorder %v45, 95
    %vm190 = vcmp.eq.s32.totalorder %v46, 95
    %vm191 = vcmp.eq.s32.totalorder %v47, 95
    %vm192 = vcmp.eq.s32.totalorder %v48, 95
    %vm193 = vcmp.eq.s32.totalorder %v49, 95
    %vm194 = vcmp.eq.s32.totalorder %v50, 95
    %vm195 = vcmp.eq.s32.totalorder %v51, 95
    %vm196 = vcmp.eq.s32.totalorder %v52, 95
    %vm197 = vcmp.eq.s32.totalorder %v53, 95
    %vm198 = vcmp.eq.s32.totalorder %v54, 95
    %vm199 = vcmp.eq.s32.totalorder %v55, 95
    %vm200 = vcmp.eq.s32.totalorder %v56, 95
    %vm201 = vmor %vm169, %vm185
    %vm202 = vmor %vm170, %vm186
    %vm203 = vmor %vm171, %vm187
    %vm204 = vmor %vm172, %vm188
    %vm205 = vmor %vm173, %vm189
    %vm206 = vmor %vm174, %vm190
    %vm207 = vmor %vm175, %vm191
    %vm208 = vmor %vm176, %vm192
    %vm209 = vmor %vm177, %vm193
    %vm210 = vmor %vm178, %vm194
    %vm211 = vmor %vm179, %vm195
    %vm212 = vmor %vm180, %vm196
    %vm213 = vmor %vm181, %vm197
    %vm214 = vmor %vm182, %vm198
    %vm215 = vmor %vm183, %vm199
    %vm216 = vmor %vm184, %vm200
    %vm217 = vcmp.eq.s32.totalorder %v41, 32
    %vm218 = vcmp.eq.s32.totalorder %v42, 32
    %vm219 = vcmp.eq.s32.totalorder %v43, 32
    %vm220 = vcmp.eq.s32.totalorder %v44, 32
    %vm221 = vcmp.eq.s32.totalorder %v45, 32
    %vm222 = vcmp.eq.s32.totalorder %v46, 32
    %vm223 = vcmp.eq.s32.totalorder %v47, 32
    %vm224 = vcmp.eq.s32.totalorder %v48, 32
    %vm225 = vcmp.eq.s32.totalorder %v49, 32
    %vm226 = vcmp.eq.s32.totalorder %v50, 32
    %vm227 = vcmp.eq.s32.totalorder %v51, 32
    %vm228 = vcmp.eq.s32.totalorder %v52, 32
    %vm229 = vcmp.eq.s32.totalorder %v53, 32
    %vm230 = vcmp.eq.s32.totalorder %v54, 32
    %vm231 = vcmp.eq.s32.totalorder %v55, 32
    %vm232 = vcmp.eq.s32.totalorder %v56, 32
    %vm233 = vcmp.ge.s32.totalorder %v41, 9
    %vm234 = vcmp.ge.s32.totalorder %v42, 9
    %vm235 = vcmp.ge.s32.totalorder %v43, 9
    %vm236 = vcmp.ge.s32.totalorder %v44, 9
    %vm237 = vcmp.ge.s32.totalorder %v45, 9
    %vm238 = vcmp.ge.s32.totalorder %v46, 9
    %vm239 = vcmp.ge.s32.totalorder %v47, 9
    %vm240 = vcmp.ge.s32.totalorder %v48, 9
    %vm241 = vcmp.ge.s32.totalorder %v49, 9
    %vm242 = vcmp.ge.s32.totalorder %v50, 9
    %vm243 = vcmp.ge.s32.totalorder %v51, 9
    %vm244 = vcmp.ge.s32.totalorder %v52, 9
    %vm245 = vcmp.ge.s32.totalorder %v53, 9
    %vm246 = vcmp.ge.s32.totalorder %v54, 9
    %vm247 = vcmp.ge.s32.totalorder %v55, 9
    %vm248 = vcmp.ge.s32.totalorder %v56, 9
    %vm249 = vcmp.le.s32.totalorder %v41, 13
    %vm250 = vcmp.le.s32.totalorder %v42, 13
    %vm251 = vcmp.le.s32.totalorder %v43, 13
    %vm252 = vcmp.le.s32.totalorder %v44, 13
    %vm253 = vcmp.le.s32.totalorder %v45, 13
    %vm254 = vcmp.le.s32.totalorder %v46, 13
    %vm255 = vcmp.le.s32.totalorder %v47, 13
    %vm256 = vcmp.le.s32.totalorder %v48, 13
    %vm257 = vcmp.le.s32.totalorder %v49, 13
    %vm258 = vcmp.le.s32.totalorder %v50, 13
    %vm259 = vcmp.le.s32.totalorder %v51, 13
    %vm260 = vcmp.le.s32.totalorder %v52, 13
    %vm261 = vcmp.le.s32.totalorder %v53, 13
    %vm262 = vcmp.le.s32.totalorder %v54, 13
    %vm263 = vcmp.le.s32.totalorder %v55, 13
    %vm264 = vcmp.le.s32.totalorder %v56, 13
    %vm265 = vmand %vm233, %vm249
    %vm266 = vmand %vm234, %vm250
    %vm267 = vmand %vm235, %vm251
    %vm268 = vmand %vm236, %vm252
    %vm269 = vmand %vm237, %vm253
    %vm270 = vmand %vm238, %vm254
    %vm271 = vmand %vm239, %vm255
    %vm272 = vmand %vm240, %vm256
    %vm273 = vmand %vm241, %vm257
    %vm274 = vmand %vm242, %vm258
    %vm275 = vmand %vm243, %vm259
    %vm276 = vmand %vm244, %vm260
    %vm277 = vmand %vm245, %vm261
    %vm278 = vmand %vm246, %vm262
    %vm279 = vmand %vm247, %vm263
    %vm280 = vmand %vm248, %vm264
    %vm281 = vmor %vm217, %vm265
    %vm282 = vmor %vm218, %vm266
    %vm283 = vmor %vm219, %vm267
    %vm284 = vmor %vm220, %vm268
    %vm285 = vmor %vm221, %vm269
    %vm286 = vmor %vm222, %vm270
    %vm287 = vmor %vm223, %vm271
    %vm288 = vmor %vm224, %vm272
    %vm289 = vmor %vm225, %vm273
    %vm290 = vmor %vm226, %vm274
    %vm291 = vmor %vm227, %vm275
    %vm292 = vmor %vm228, %vm276
    %vm293 = vmor %vm229, %vm277
    %vm294 = vmor %vm230, %vm278
    %vm295 = vmor %vm231, %vm279
    %vm296 = vmor %vm232, %vm280
    %vm297 = vcmp.lt.s32.totalorder %v41, 0
    %vm298 = vcmp.lt.s32.totalorder %v42, 0
    %vm299 = vcmp.lt.s32.totalorder %v43, 0
    %vm300 = vcmp.lt.s32.totalorder %v44, 0
    %vm301 = vcmp.lt.s32.totalorder %v45, 0
    %vm302 = vcmp.lt.s32.totalorder %v46, 0
    %vm303 = vcmp.lt.s32.totalorder %v47, 0
    %vm304 = vcmp.lt.s32.totalorder %v48, 0
    %vm305 = vcmp.lt.s32.totalorder %v49, 0
    %vm306 = vcmp.lt.s32.totalorder %v50, 0
    %vm307 = vcmp.lt.s32.totalorder %v51, 0
    %vm308 = vcmp.lt.s32.totalorder %v52, 0
    %vm309 = vcmp.lt.s32.totalorder %v53, 0
    %vm310 = vcmp.lt.s32.totalorder %v54, 0
    %vm311 = vcmp.lt.s32.totalorder %v55, 0
    %vm312 = vcmp.lt.s32.totalorder %v56, 0
    %vm313 = vmor %vm201, %vm281
    %vm314 = vmor %vm202, %vm282
    %vm315 = vmor %vm203, %vm283
    %vm316 = vmor %vm204, %vm284
    %vm317 = vmor %vm205, %vm285
    %vm318 = vmor %vm206, %vm286
    %vm319 = vmor %vm207, %vm287
    %vm320 = vmor %vm208, %vm288
    %vm321 = vmor %vm209, %vm289
    %vm322 = vmor %vm210, %vm290
    %vm323 = vmor %vm211, %vm291
    %vm324 = vmor %vm212, %vm292
    %vm325 = vmor %vm213, %vm293
    %vm326 = vmor %vm214, %vm294
    %vm327 = vmor %vm215, %vm295
    %vm328 = vmor %vm216, %vm296
    %vm329 = vmor %vm313, %vm297
    %vm330 = vmor %vm314, %vm298
    %vm331 = vmor %vm315, %vm299
    %vm332 = vmor %vm316, %vm300
    %vm333 = vmor %vm317, %vm301
    %vm334 = vmor %vm318, %vm302
    %vm335 = vmor %vm319, %vm303
    %vm336 = vmor %vm320, %vm304
    %vm337 = vmor %vm321, %vm305
    %vm338 = vmor %vm322, %vm306
    %vm339 = vmor %vm323, %vm307
    %vm340 = vmor %vm324, %vm308
    %vm341 = vmor %vm325, %vm309
    %vm342 = vmor %vm326, %vm310
    %vm343 = vmor %vm327, %vm311
    %vm344 = vmor %vm328, %vm312
    %vm345 = vmxor %vm329, 1
    %vm346 = vmxor %vm330, 1
    %vm347 = vmxor %vm331, 1
    %vm348 = vmxor %vm332, 1
    %vm349 = vmxor %vm333, 1
    %vm350 = vmxor %vm334, 1
    %vm351 = vmxor %vm335, 1
    %vm352 = vmxor %vm336, 1
    %vm353 = vmxor %vm337, 1
    %vm354 = vmxor %vm338, 1
    %vm355 = vmxor %vm339, 1
    %vm356 = vmxor %vm340, 1
    %vm357 = vmxor %vm341, 1
    %vm358 = vmxor %vm342, 1
    %vm359 = vmxor %vm343, 1
    %vm360 = vmxor %vm344, 1
    %v361 = vsel %vm201, 1, 0
    %v362 = vsel %vm202, 1, 0
    %v363 = vsel %vm203, 1, 0
    %v364 = vsel %vm204, 1, 0
    %v365 = vsel %vm205, 1, 0
    %v366 = vsel %vm206, 1, 0
    %v367 = vsel %vm207, 1, 0
    %v368 = vsel %vm208, 1, 0
    %v369 = vsel %vm209, 1, 0
    %v370 = vsel %vm210, 1, 0
    %v371 = vsel %vm211, 1, 0
    %v372 = vsel %vm212, 1, 0
    %v373 = vsel %vm213, 1, 0
    %v374 = vsel %vm214, 1, 0
    %v375 = vsel %vm215, 1, 0
    %v376 = vsel %vm216, 1, 0
    %v377 = vsel %vm345, 1, 0
    %v378 = vsel %vm346, 1, 0
    %v379 = vsel %vm347, 1, 0
    %v380 = vsel %vm348, 1, 0
    %v381 = vsel %vm349, 1, 0
    %v382 = vsel %vm350, 1, 0
    %v383 = vsel %vm351, 1, 0
    %v384 = vsel %vm352, 1, 0
    %v385 = vsel %vm353, 1, 0
    %v386 = vsel %vm354, 1, 0
    %v387 = vsel %vm355, 1, 0
    %v388 = vsel %vm356, 1, 0
    %v389 = vsel %vm357, 1, 0
    %v390 = vsel %vm358, 1, 0
    %v391 = vsel %vm359, 1, 0
    %v392 = vsel %vm360, 1, 0
    %v393 = vlaneseq
    %v394 = vand.u32 %v393, 127
    %395 = vrot.lane.b32.xlu0 %v361, 1
    %v396 = vpop.permute.xlu0 %395
    %397 = vrot.lane.b32.xlu0 %v362, 1
    %v398 = vpop.permute.xlu0 %397
    %399 = vrot.lane.b32.xlu0 %v363, 1
    %v400 = vpop.permute.xlu0 %399
    %401 = vrot.lane.b32.xlu0 %v364, 1
    %v402 = vpop.permute.xlu0 %401
    %403 = vrot.lane.b32.xlu0 %v365, 1
    %v404 = vpop.permute.xlu0 %403
    %405 = vrot.lane.b32.xlu0 %v366, 1
    %v406 = vpop.permute.xlu0 %405
    %407 = vrot.lane.b32.xlu0 %v367, 1
    %v408 = vpop.permute.xlu0 %407
    %409 = vrot.lane.b32.xlu0 %v368, 1
    %v410 = vpop.permute.xlu0 %409
    %411 = vrot.lane.b32.xlu0 %v369, 1
    %v412 = vpop.permute.xlu0 %411
    %413 = vrot.lane.b32.xlu0 %v370, 1
    %v414 = vpop.permute.xlu0 %413
    %415 = vrot.lane.b32.xlu0 %v371, 1
    %v416 = vpop.permute.xlu0 %415
    %417 = vrot.lane.b32.xlu0 %v372, 1
    %v418 = vpop.permute.xlu0 %417
    %419 = vrot.lane.b32.xlu0 %v373, 1
    %v420 = vpop.permute.xlu0 %419
    %421 = vrot.lane.b32.xlu0 %v374, 1
    %v422 = vpop.permute.xlu0 %421
    %423 = vrot.lane.b32.xlu0 %v375, 1
    %v424 = vpop.permute.xlu0 %423
    %425 = vrot.lane.b32.xlu0 %v376, 1
    %v426 = vpop.permute.xlu0 %425
    %vm427 = vcmp.eq.s32.totalorder %v394, 0
    %v428 = vsel %vm427, 0, %v396
    %v429 = vsel %vm427, 0, %v398
    %v430 = vsel %vm427, 0, %v400
    %v431 = vsel %vm427, 0, %v402
    %v432 = vsel %vm427, 0, %v404
    %v433 = vsel %vm427, 0, %v406
    %v434 = vsel %vm427, 0, %v408
    %v435 = vsel %vm427, 0, %v410
    %v436 = vsel %vm427, 0, %v412
    %v437 = vsel %vm427, 0, %v414
    %v438 = vsel %vm427, 0, %v416
    %v439 = vsel %vm427, 0, %v418
    %v440 = vsel %vm427, 0, %v420
    %v441 = vsel %vm427, 0, %v422
    %v442 = vsel %vm427, 0, %v424
    %v443 = vsel %vm427, 0, %v426
    %vm444 = vcmp.eq.s32.totalorder %v428, 0
    %vm445 = vcmp.eq.s32.totalorder %v429, 0
    %vm446 = vcmp.eq.s32.totalorder %v430, 0
    %vm447 = vcmp.eq.s32.totalorder %v431, 0
    %vm448 = vcmp.eq.s32.totalorder %v432, 0
    %vm449 = vcmp.eq.s32.totalorder %v433, 0
    %vm450 = vcmp.eq.s32.totalorder %v434, 0
    %vm451 = vcmp.eq.s32.totalorder %v435, 0
    %vm452 = vcmp.eq.s32.totalorder %v436, 0
    %vm453 = vcmp.eq.s32.totalorder %v437, 0
    %vm454 = vcmp.eq.s32.totalorder %v438, 0
    %vm455 = vcmp.eq.s32.totalorder %v439, 0
    %vm456 = vcmp.eq.s32.totalorder %v440, 0
    %vm457 = vcmp.eq.s32.totalorder %v441, 0
    %vm458 = vcmp.eq.s32.totalorder %v442, 0
    %vm459 = vcmp.eq.s32.totalorder %v443, 0
    %vm460 = vmand %vm201, %vm444
    %vm461 = vmand %vm202, %vm445
    %vm462 = vmand %vm203, %vm446
    %vm463 = vmand %vm204, %vm447
    %vm464 = vmand %vm205, %vm448
    %vm465 = vmand %vm206, %vm449
    %vm466 = vmand %vm207, %vm450
    %vm467 = vmand %vm208, %vm451
    %vm468 = vmand %vm209, %vm452
    %vm469 = vmand %vm210, %vm453
    %vm470 = vmand %vm211, %vm454
    %vm471 = vmand %vm212, %vm455
    %vm472 = vmand %vm213, %vm456
    %vm473 = vmand %vm214, %vm457
    %vm474 = vmand %vm215, %vm458
    %vm475 = vmand %vm216, %vm459
    %vm476 = vmor %vm460, %vm345
    %vm477 = vmor %vm461, %vm346
    %vm478 = vmor %vm462, %vm347
    %vm479 = vmor %vm463, %vm348
    %vm480 = vmor %vm464, %vm349
    %vm481 = vmor %vm465, %vm350
    %vm482 = vmor %vm466, %vm351
    %vm483 = vmor %vm467, %vm352
    %vm484 = vmor %vm468, %vm353
    %vm485 = vmor %vm469, %vm354
    %vm486 = vmor %vm470, %vm355
    %vm487 = vmor %vm471, %vm356
    %vm488 = vmor %vm472, %vm357
    %vm489 = vmor %vm473, %vm358
    %vm490 = vmor %vm474, %vm359
    %vm491 = vmor %vm475, %vm360
    %v492 = vsel %vm476, 1, 0
    %v493 = vsel %vm477, 1, 0
    %v494 = vsel %vm478, 1, 0
    %v495 = vsel %vm479, 1, 0
    %v496 = vsel %vm480, 1, 0
    %v497 = vsel %vm481, 1, 0
    %v498 = vsel %vm482, 1, 0
    %v499 = vsel %vm483, 1, 0
    %v500 = vsel %vm484, 1, 0
    %v501 = vsel %vm485, 1, 0
    %v502 = vsel %vm486, 1, 0
    %v503 = vsel %vm487, 1, 0
    %v504 = vsel %vm488, 1, 0
    %v505 = vsel %vm489, 1, 0
    %v506 = vsel %vm490, 1, 0
    %v507 = vsel %vm491, 1, 0
    %v508 = vcvt.s32.f32 %v492
    %v509 = vcvt.s32.f32 %v493
    %v510 = vcvt.s32.f32 %v494
    %v511 = vcvt.s32.f32 %v495
    %v512 = vcvt.s32.f32 %v496
    %v513 = vcvt.s32.f32 %v497
    %v514 = vcvt.s32.f32 %v498
    %v515 = vcvt.s32.f32 %v499
    %v516 = vcvt.s32.f32 %v500
    %v517 = vcvt.s32.f32 %v501
    %v518 = vcvt.s32.f32 %v502
    %v519 = vcvt.s32.f32 %v503
    %v520 = vcvt.s32.f32 %v504
    %v521 = vcvt.s32.f32 %v505
    %v522 = vcvt.s32.f32 %v506
    %v523 = vcvt.s32.f32 %v507
    %v524 = vpack.c.bf16 %v509, %v508
    %v525 = vpack.c.bf16 %v511, %v510
    %v526 = vpack.c.bf16 %v513, %v512
    %v527 = vpack.c.bf16 %v515, %v514
    %v528 = vpack.c.bf16 %v517, %v516
    %v529 = vpack.c.bf16 %v519, %v518
    %v530 = vpack.c.bf16 %v521, %v520
    %v531 = vpack.c.bf16 %v523, %v522
    %v532 = vld [vmem:[#allocation5] sm:$0xf]
    %v533 = vld [vmem:[#allocation5 + $0x4] sm:$0xf]
    %v534 = vld [vmem:[#allocation5 + $0x8] sm:$0xf]
    %v535 = vld [vmem:[#allocation5 + $0xc] sm:$0xf]
    %v536 = vld [vmem:[#allocation5 + $0x10] sm:$0xf]
    %v537 = vld [vmem:[#allocation5 + $0x14] sm:$0xf]
    %v538 = vld [vmem:[#allocation5 + $0x18] sm:$0xf]
    %v539 = vld [vmem:[#allocation5 + $0x1c] sm:$0xf]
    %v540 = vld [vmem:[#allocation5 + $0x20] sm:$0xf]
    %v541 = vld [vmem:[#allocation5 + $0x24] sm:$0xf]
    %v542 = vld [vmem:[#allocation5 + $0x28] sm:$0xf]
    %v543 = vld [vmem:[#allocation5 + $0x2c] sm:$0xf]
    %v544 = vld [vmem:[#allocation5 + $0x30] sm:$0xf]
    %v545 = vld [vmem:[#allocation5 + $0x34] sm:$0xf]
    %v546 = vld [vmem:[#allocation5 + $0x38] sm:$0xf]
    %v547 = vld [vmem:[#allocation5 + $0x3c] sm:$0xf]
    %v564 = vunpack.c.l.b16 %v532
    %v565 = vunpack.c.l.b16 %v533
    %v566 = vunpack.c.l.b16 %v534
    %v567 = vunpack.c.l.b16 %v535
    %v568 = vunpack.c.l.b16 %v536
    %v569 = vunpack.c.l.b16 %v537
    %v570 = vunpack.c.l.b16 %v538
    %v571 = vunpack.c.l.b16 %v539
    %v572 = vunpack.c.l.b16 %v540
    %v573 = vunpack.c.l.b16 %v541
    %v574 = vunpack.c.l.b16 %v542
    %v575 = vunpack.c.l.b16 %v543
    %v576 = vunpack.c.l.b16 %v544
    %v577 = vunpack.c.l.b16 %v545
    %v578 = vunpack.c.l.b16 %v546
    %v579 = vunpack.c.l.b16 %v547
    %v580 = vpack.c.b16 %v565, %v564
    %v581 = vpack.c.b16 %v567, %v566
    %v582 = vpack.c.b16 %v569, %v568
    %v583 = vpack.c.b16 %v571, %v570
    %v584 = vpack.c.b16 %v573, %v572
    %v585 = vpack.c.b16 %v575, %v574
    %v586 = vpack.c.b16 %v577, %v576
    %v587 = vpack.c.b16 %v579, %v578
    %596 = vmatprep.subr.bf16.mxu0 0
    %597 = vmatpush1.bf16.msra.mxu0 %v580
    %598 = vmatprep.subr.bf16.mxu0 0
    %599 = vmatpush1.bf16.msra.mxu0 %v581
    %600 = vmatprep.subr.bf16.mxu0 0
    %601 = vmatpush1.bf16.msra.mxu0 %v582
    %602 = vmatprep.subr.bf16.mxu0 0
    %603 = vmatpush1.bf16.msra.mxu0 %v583
    %604 = vmatprep.subr.bf16.mxu0 0
    %605 = vmatpush1.bf16.msra.mxu0 %v584
    %606 = vmatprep.subr.bf16.mxu0 0
    %607 = vmatpush1.bf16.msra.mxu0 %v585
    %608 = vmatprep.subr.bf16.mxu0 0
    %609 = vmatpush1.bf16.msra.mxu0 %v586
    %610 = vmatprep.subr.bf16.mxu0 0
    %611 = vmatpush1.bf16.msra.mxu0 %v587
    %612 = vmatprep.subr.bf16.mxu0 0
    %613 = vmatpush1.bf16.msra.mxu0 0
    %614 = vmatprep.subr.bf16.mxu0 0
    %615 = vmatpush1.bf16.msra.mxu0 0
    %616 = vmatprep.subr.bf16.mxu0 0
    %617 = vmatpush1.bf16.msra.mxu0 0
    %618 = vmatprep.subr.bf16.mxu0 0
    %619 = vmatpush1.bf16.msra.mxu0 0
    %620 = vmatprep.subr.bf16.mxu0 0
    %621 = vmatpush1.bf16.msra.mxu0 0
    %622 = vmatprep.subr.bf16.mxu0 0
    %623 = vmatpush1.bf16.msra.mxu0 0
    %624 = vmatprep.subr.bf16.mxu0 0
    %625 = vmatpush1.bf16.msra.mxu0 0
    %626 = vmatprep.subr.bf16.mxu0 0
    %627 = vmatpush1.bf16.msra.mxu0 0
    %628 = vmatprep.mubr.bf16.mxu0 0
    %629 = vmatmul.mubr.bf16.gmra.mrb[0].mxu0 %v524
    %v630 = vpop.f32.mrb[0].mxu0
    %v631 = vadd.f32 0.0, %v630
    %v632 = vpop.f32.mrb[0].mxu0
    %v633 = vpop.f32.mrb[0].mxu0
    %v634 = vadd.f32 0.0, %v633
    %v635 = vpop.f32.mrb[0].mxu0
    %636 = vmatprep.mubr.bf16.mxu0 0
    %637 = vmatmul.mubr.bf16.gmra.mrb[0].mxu0 %v525
    %v638 = vpop.f32.mrb[0].mxu0
    %v639 = vadd.f32 0.0, %v638
    %v640 = vpop.f32.mrb[0].mxu0
    %v641 = vpop.f32.mrb[0].mxu0
    %v642 = vadd.f32 0.0, %v641
    %v643 = vpop.f32.mrb[0].mxu0
    %644 = vmatprep.mubr.bf16.mxu0 0
    %645 = vmatmul.mubr.bf16.gmra.mrb[0].mxu0 %v526
    %v646 = vpop.f32.mrb[0].mxu0
    %v647 = vadd.f32 0.0, %v646
    %v648 = vpop.f32.mrb[0].mxu0
    %v649 = vpop.f32.mrb[0].mxu0
    %v650 = vadd.f32 0.0, %v649
    %v651 = vpop.f32.mrb[0].mxu0
    %652 = vmatprep.mubr.bf16.mxu0 0
    %653 = vmatmul.mubr.bf16.gmra.mrb[0].mxu0 %v527
    %v654 = vpop.f32.mrb[0].mxu0
    %v655 = vadd.f32 0.0, %v654
    %v656 = vpop.f32.mrb[0].mxu0
    %v657 = vpop.f32.mrb[0].mxu0
    %v658 = vadd.f32 0.0, %v657
    %v659 = vpop.f32.mrb[0].mxu0
    %660 = vmatprep.mubr.bf16.mxu0 0
    %661 = vmatmul.mubr.bf16.gmra.mrb[0].mxu0 %v528
    %v662 = vpop.f32.mrb[0].mxu0
    %v663 = vadd.f32 0.0, %v662
    %v664 = vpop.f32.mrb[0].mxu0
    %v665 = vpop.f32.mrb[0].mxu0
    %v666 = vadd.f32 0.0, %v665
    %v667 = vpop.f32.mrb[0].mxu0
    %668 = vmatprep.mubr.bf16.mxu0 0
    %669 = vmatmul.mubr.bf16.gmra.mrb[0].mxu0 %v529
    %v670 = vpop.f32.mrb[0].mxu0
    %v671 = vadd.f32 0.0, %v670
    %v672 = vpop.f32.mrb[0].mxu0
    %v673 = vpop.f32.mrb[0].mxu0
    %v674 = vadd.f32 0.0, %v673
    %v675 = vpop.f32.mrb[0].mxu0
    %676 = vmatprep.mubr.bf16.mxu0 0
    %677 = vmatmul.mubr.bf16.gmra.mrb[0].mxu0 %v530
    %v678 = vpop.f32.mrb[0].mxu0
    %v679 = vadd.f32 0.0, %v678
    %v680 = vpop.f32.mrb[0].mxu0
    %v681 = vpop.f32.mrb[0].mxu0
    %v682 = vadd.f32 0.0, %v681
    %v683 = vpop.f32.mrb[0].mxu0
    %684 = vmatprep.mubr.bf16.mxu0 0
    %685 = vmatmul.mubr.bf16.gmra.mrb[0].mxu0 %v531
    %v686 = vpop.f32.mrb[0].mxu0
    %v687 = vadd.f32 0.0, %v686
    %v688 = vpop.f32.mrb[0].mxu0
    %v689 = vpop.f32.mrb[0].mxu0
    %v690 = vadd.f32 0.0, %v689
    %v691 = vpop.f32.mrb[0].mxu0
    %692 = vdwg.mxu0
    %v693 = vcvt.f32.s32.to.zero.pseudo %v631
    %v694 = vcvt.f32.s32.to.zero.pseudo %v634
    %v695 = vcvt.f32.s32.to.zero.pseudo %v639
    %v696 = vcvt.f32.s32.to.zero.pseudo %v642
    %v697 = vcvt.f32.s32.to.zero.pseudo %v647
    %v698 = vcvt.f32.s32.to.zero.pseudo %v650
    %v699 = vcvt.f32.s32.to.zero.pseudo %v655
    %v700 = vcvt.f32.s32.to.zero.pseudo %v658
    %v701 = vcvt.f32.s32.to.zero.pseudo %v663
    %v702 = vcvt.f32.s32.to.zero.pseudo %v666
    %v703 = vcvt.f32.s32.to.zero.pseudo %v671
    %v704 = vcvt.f32.s32.to.zero.pseudo %v674
    %v705 = vcvt.f32.s32.to.zero.pseudo %v679
    %v706 = vcvt.f32.s32.to.zero.pseudo %v682
    %v707 = vcvt.f32.s32.to.zero.pseudo %v687
    %v708 = vcvt.f32.s32.to.zero.pseudo %v690
    %v709 = vshll.u32 %v693, 2
    %v710 = vshll.u32 %v694, 2
    %v711 = vshll.u32 %v695, 2
    %v712 = vshll.u32 %v696, 2
    %v713 = vshll.u32 %v697, 2
    %v714 = vshll.u32 %v698, 2
    %v715 = vshll.u32 %v699, 2
    %v716 = vshll.u32 %v700, 2
    %v717 = vshll.u32 %v701, 2
    %v718 = vshll.u32 %v702, 2
    %v719 = vshll.u32 %v703, 2
    %v720 = vshll.u32 %v704, 2
    %v721 = vshll.u32 %v705, 2
    %v722 = vshll.u32 %v706, 2
    %v723 = vshll.u32 %v707, 2
    %v724 = vshll.u32 %v708, 2
    %v725 = vshll.u32 %v377, 1
    %v726 = vshll.u32 %v378, 1
    %v727 = vshll.u32 %v379, 1
    %v728 = vshll.u32 %v380, 1
    %v729 = vshll.u32 %v381, 1
    %v730 = vshll.u32 %v382, 1
    %v731 = vshll.u32 %v383, 1
    %v732 = vshll.u32 %v384, 1
    %v733 = vshll.u32 %v385, 1
    %v734 = vshll.u32 %v386, 1
    %v735 = vshll.u32 %v387, 1
    %v736 = vshll.u32 %v388, 1
    %v737 = vshll.u32 %v389, 1
    %v738 = vshll.u32 %v390, 1
    %v739 = vshll.u32 %v391, 1
    %v740 = vshll.u32 %v392, 1
    %v741 = vor.u32 %v709, %v725
    %v742 = vor.u32 %v710, %v726
    %v743 = vor.u32 %v711, %v727
    %v744 = vor.u32 %v712, %v728
    %v745 = vor.u32 %v713, %v729
    %v746 = vor.u32 %v714, %v730
    %v747 = vor.u32 %v715, %v731
    %v748 = vor.u32 %v716, %v732
    %v749 = vor.u32 %v717, %v733
    %v750 = vor.u32 %v718, %v734
    %v751 = vor.u32 %v719, %v735
    %v752 = vor.u32 %v720, %v736
    %v753 = vor.u32 %v721, %v737
    %v754 = vor.u32 %v722, %v738
    %v755 = vor.u32 %v723, %v739
    %v756 = vor.u32 %v724, %v740
    %v757 = vor.u32 %v741, %v361
    %v758 = vor.u32 %v742, %v362
    %v759 = vor.u32 %v743, %v363
    %v760 = vor.u32 %v744, %v364
    %v761 = vor.u32 %v745, %v365
    %v762 = vor.u32 %v746, %v366
    %v763 = vor.u32 %v747, %v367
    %v764 = vor.u32 %v748, %v368
    %v765 = vor.u32 %v749, %v369
    %v766 = vor.u32 %v750, %v370
    %v767 = vor.u32 %v751, %v371
    %v768 = vor.u32 %v752, %v372
    %v769 = vor.u32 %v753, %v373
    %v770 = vor.u32 %v754, %v374
    %v771 = vor.u32 %v755, %v375
    %v772 = vor.u32 %v756, %v376
    %v773 = vpack.c.b16 %v757, %v757
    %v774 = vpack.c.b16 %v758, %v758
    %v775 = vpack.c.b16 %v759, %v759
    %v776 = vpack.c.b16 %v760, %v760
    %v777 = vpack.c.b16 %v761, %v761
    %v778 = vpack.c.b16 %v762, %v762
    %v779 = vpack.c.b16 %v763, %v763
    %v780 = vpack.c.b16 %v764, %v764
    %v781 = vpack.c.b16 %v765, %v765
    %v782 = vpack.c.b16 %v766, %v766
    %v783 = vpack.c.b16 %v767, %v767
    %v784 = vpack.c.b16 %v768, %v768
    %v785 = vpack.c.b16 %v769, %v769
    %v786 = vpack.c.b16 %v770, %v770
    %v787 = vpack.c.b16 %v771, %v771
    %v788 = vpack.c.b16 %v772, %v772
    %789 = vst [vmem:[#allocation7] sm:$0xf] %v773
    %790 = vst [vmem:[#allocation7 + $0x4] sm:$0xf] %v774
    %791 = vst [vmem:[#allocation7 + $0x8] sm:$0xf] %v775
    %792 = vst [vmem:[#allocation7 + $0xc] sm:$0xf] %v776
    %793 = vst [vmem:[#allocation7 + $0x10] sm:$0xf] %v777
    %794 = vst [vmem:[#allocation7 + $0x14] sm:$0xf] %v778
    %795 = vst [vmem:[#allocation7 + $0x18] sm:$0xf] %v779
    %796 = vst [vmem:[#allocation7 + $0x1c] sm:$0xf] %v780
    %797 = vst [vmem:[#allocation7 + $0x20] sm:$0xf] %v781
    %798 = vst [vmem:[#allocation7 + $0x24] sm:$0xf] %v782
    %799 = vst [vmem:[#allocation7 + $0x28] sm:$0xf] %v783
    %800 = vst [vmem:[#allocation7 + $0x2c] sm:$0xf] %v784
    %801 = vst [vmem:[#allocation7 + $0x30] sm:$0xf] %v785
    %802 = vst [vmem:[#allocation7 + $0x34] sm:$0xf] %v786
    %803 = vst [vmem:[#allocation7 + $0x38] sm:$0xf] %v787
    %804 = vst [vmem:[#allocation7 + $0x3c] sm:$0xf] %v788
    // Predicated region
    $region18: #{pallas_char_classify.1} parent=1 // pred_check
      _
    $region19: #{pallas_char_classify.1} parent=1 // pred_check_branch
      %806 = sbr.rel (0) target = $region21
    $region20: #{pallas_char_classify.1} parent=1 // pred_region
      %s808 = ssub.s32 1024, 1024
      %809 = vsyncadd [#allocation4], %s808
      %s810 = sshll.u32 [#allocation7], 4
      %s811 = int_to_ptr.vmem [resolvable:$true] %s810
      %816 = dma.vmem_to_hbm [thread:$0]  %s811, 1024, %s2, [#allocation4], 64, 64, 4
    $region21: #{pallas_char_classify.1} parent=1 // pred_fallthru
      _
    // Predicated region
    $region22: #{pallas_char_classify.1} parent=1 // pred_check
      _
    $region23: #{pallas_char_classify.1} parent=1 // pred_check_branch
      %818 = sbr.rel (0) target = $region25
    $region24: #{pallas_char_classify.1} parent=1 // pred_region
      %819 = dma.done [#allocation4], 1024
    $region25: #{pallas_char_classify.1} parent=1 // pred_fallthru
      _
    %820 = vsyncpa [#allocation3], 1
    %821 = vsyncpa [#allocation6], 1
    %822 = vsyncpa [#allocation4], 1

</llo_original>
